<compile_context>
chip_gen: v7x
topology: tpu7x:2x2x1
jax: 0.10.0
libtpu: 0.0.40
codegen_flags: <defaults>
</compile_context>

<pallas_src>
import jax
import jax.numpy as jnp
from jax.experimental import pallas as pl
from jax.experimental.pallas import tpu as pltpu


# --------------------------------------------------------------------------
# Stage 1: v_agg = a_tile @ v + eps * v_tile ; h = v_agg @ W1 + b1
#          + accumulate per-channel sum / sumsq of h for BatchNorm1d #1
# --------------------------------------------------------------------------
def _stage1_kernel(a_ref, v_full_ref, v_tile_ref, eps_ref, w1_ref, b1_ref,
                   h_ref, sum_ref, sq_ref):
    i = pl.program_id(0)

    agg = jnp.dot(a_ref[...].astype(jnp.float32),
                  v_full_ref[...].astype(jnp.float32),
                  preferred_element_type=jnp.float32)
    agg = agg + eps_ref[0, 0] * v_tile_ref[...].astype(jnp.float32)

    h = jnp.dot(agg, w1_ref[...].astype(jnp.float32),
                preferred_element_type=jnp.float32)
    h = h + b1_ref[...].astype(jnp.float32)
    h_ref[...] = h.astype(h_ref.dtype)

    @pl.when(i == 0)
    def _init():
        sum_ref[...] = jnp.zeros_like(sum_ref)
        sq_ref[...] = jnp.zeros_like(sq_ref)

    sum_ref[...] += jnp.sum(h, axis=0, keepdims=True)
    sq_ref[...] += jnp.sum(h * h, axis=0, keepdims=True)


# --------------------------------------------------------------------------
# Stage 2: y = relu(h * scale1 + shift1) ; o = y @ W2 + b2
#          + accumulate per-channel sum / sumsq of o for BatchNorm1d #2
# --------------------------------------------------------------------------
def _stage2_kernel(h_ref, scale1_ref, shift1_ref, w2_ref, b2_ref,
                   o_ref, sum_ref, sq_ref):
    i = pl.program_id(0)

    h = h_ref[...].astype(jnp.float32)
    y = jnp.maximum(h * scale1_ref[...] + shift1_ref[...], 0.0)

    o = jnp.dot(y, w2_ref[...].astype(jnp.float32),
                preferred_element_type=jnp.float32)
    o = o + b2_ref[...].astype(jnp.float32)
    o_ref[...] = o.astype(o_ref.dtype)

    @pl.when(i == 0)
    def _init():
        sum_ref[...] = jnp.zeros_like(sum_ref)
        sq_ref[...] = jnp.zeros_like(sq_ref)

    sum_ref[...] += jnp.sum(o, axis=0, keepdims=True)
    sq_ref[...] += jnp.sum(o * o, axis=0, keepdims=True)


# --------------------------------------------------------------------------
# Stage 3: out = relu(o * scale2 + shift2)   (pure elementwise, row-parallel)
# --------------------------------------------------------------------------
def _stage3_kernel(o_ref, scale2_ref, shift2_ref, out_ref):
    o = o_ref[...].astype(jnp.float32)
    out_ref[...] = jnp.maximum(
        o * scale2_ref[...] + shift2_ref[...], 0.0).astype(out_ref.dtype)


def _bn_scale_shift(s, q, n_rows, gamma, beta, eps):
    """Fold BN(batch stats, biased var) + affine into per-channel scale/shift."""
    mean = s / n_rows                                   # (1, C)
    var = jnp.maximum(q / n_rows - mean * mean, 0.0)    # biased variance
    scale = gamma.reshape(1, -1).astype(jnp.float32) * jax.lax.rsqrt(var + eps)
    shift = beta.reshape(1, -1).astype(jnp.float32) - mean * scale
    return scale, shift


def layer_gin_forward(v, a, epsilon, w1, b1, gamma1, beta1,
                      w2, b2, gamma2, beta2, *, bn_eps=1e-5, row_tile=None):
    """LayerGIN forward.

    v: (N, D_in) node features, a: (N, N) dense adjacency,
    epsilon: (1, 1) learnable scalar, w1: (D_in, H), w2: (H, D_out),
    b*/gamma*/beta*: per-channel vectors.  Returns (N, D_out), dtype of v.
    """
    n, d_in = v.shape
    h_dim = w1.shape[1]
    d_out = w2.shape[1]

    if row_tile is None:
        row_tile = n if n <= 512 else 512
    assert n % row_tile == 0 and row_tile % 8 == 0, "row_tile must tile N, mult of 8"
    grid = (n // row_tile,)

    b1_2d = b1.reshape(1, h_dim)
    b2_2d = b2.reshape(1, d_out)
    eps_2d = epsilon.reshape(1, 1).astype(jnp.float32)

    fsz = 4  # fp32 bytes

    # ---- stage 1 ---------------------------------------------------------
    h_pre, s1, q1 = pl.pallas_call(
        _stage1_kernel,
        out_shape=(
            jax.ShapeDtypeStruct((n, h_dim), jnp.float32),
            jax.ShapeDtypeStruct((1, h_dim), jnp.float32),
            jax.ShapeDtypeStruct((1, h_dim), jnp.float32),
        ),
        grid=grid,
        in_specs=[
            pl.BlockSpec((row_tile, n), lambda i: (i, 0)),         # a row tile
            pl.BlockSpec((n, d_in), lambda i: (0, 0)),             # v (full)
            pl.BlockSpec((row_tile, d_in), lambda i: (i, 0)),      # v row tile
            pl.BlockSpec(memory_space=pltpu.MemorySpace.SMEM),     # epsilon
            pl.BlockSpec((d_in, h_dim), lambda i: (0, 0)),         # W1
            pl.BlockSpec((1, h_dim), lambda i: (0, 0)),            # b1
        ],
        out_specs=(
            pl.BlockSpec((row_tile, h_dim), lambda i: (i, 0)),
            pl.BlockSpec((1, h_dim), lambda i: (0, 0)),
            pl.BlockSpec((1, h_dim), lambda i: (0, 0)),
        ),
        compiler_params=pltpu.CompilerParams(
            dimension_semantics=("arbitrary",)),   # cross-tile stat accumulation
        cost_estimate=pl.CostEstimate(
            flops=2 * n * n * d_in + 2 * n * d_in * h_dim + 6 * n * h_dim,
            transcendentals=0,
            bytes_accessed=fsz * (n * n + 2 * n * d_in + d_in * h_dim
                                  + 2 * n * h_dim)),
    )(a, v, v, eps_2d, w1, b1_2d)

    scale1, shift1 = _bn_scale_shift(s1, q1, n, gamma1, beta1, bn_eps)

    # ---- stage 2 ---------------------------------------------------------
    o_pre, s2, q2 = pl.pallas_call(
        _stage2_kernel,
        out_shape=(
            jax.ShapeDtypeStruct((n, d_out), jnp.float32),
            jax.ShapeDtypeStruct((1, d_out), jnp.float32),
            jax.ShapeDtypeStruct((1, d_out), jnp.float32),
        ),
        grid=grid,
        in_specs=[
            pl.BlockSpec((row_tile, h_dim), lambda i: (i, 0)),     # h tile
            pl.BlockSpec((1, h_dim), lambda i: (0, 0)),            # scale1
            pl.BlockSpec((1, h_dim), lambda i: (0, 0)),            # shift1
            pl.BlockSpec((h_dim, d_out), lambda i: (0, 0)),        # W2
            pl.BlockSpec((1, d_out), lambda i: (0, 0)),            # b2
        ],
        out_specs=(
            pl.BlockSpec((row_tile, d_out), lambda i: (i, 0)),
            pl.BlockSpec((1, d_out), lambda i: (0, 0)),
            pl.BlockSpec((1, d_out), lambda i: (0, 0)),
        ),
        compiler_params=pltpu.CompilerParams(
            dimension_semantics=("arbitrary",)),
        cost_estimate=pl.CostEstimate(
            flops=2 * n * h_dim * d_out + 4 * n * h_dim + 6 * n * d_out,
            transcendentals=0,
            bytes_accessed=fsz * (n * h_dim + h_dim * d_out + 2 * n * d_out)),
    )(h_pre, scale1, shift1, w2, b2_2d)

    scale2, shift2 = _bn_scale_shift(s2, q2, n, gamma2, beta2, bn_eps)

    # ---- stage 3 ---------------------------------------------------------
    out = pl.pallas_call(
        _stage3_kernel,
        out_shape=jax.ShapeDtypeStruct((n, d_out), v.dtype),
        grid=grid,
        in_specs=[
            pl.BlockSpec((row_tile, d_out), lambda i: (i, 0)),
            pl.BlockSpec((1, d_out), lambda i: (0, 0)),
            pl.BlockSpec((1, d_out), lambda i: (0, 0)),
        ],
        out_specs=pl.BlockSpec((row_tile, d_out), lambda i: (i, 0)),
        compiler_params=pltpu.CompilerParams(
            dimension_semantics=("parallel",)),    # independent row tiles
        cost_estimate=pl.CostEstimate(
            flops=4 * n * d_out, transcendentals=0,
            bytes_accessed=fsz * 2 * n * d_out),
    )(o_pre, scale2, shift2)

    return out


def _reference_gin(v, a, epsilon, w1, b1, g1, be1, w2, b2, g2, be2, bn_eps=1e-5):
    """Pure-JAX reference: LayerGIN forward in training mode."""
    def bn(x, g, b):
        m = jnp.mean(x, axis=0, keepdims=True)
        var = jnp.mean((x - m) ** 2, axis=0, keepdims=True)  # biased
        return (x - m) / jnp.sqrt(var + bn_eps) * g.reshape(1, -1) + b.reshape(1, -1)

    agg = a @ v + epsilon[0, 0] * v
    h = agg @ w1 + b1.reshape(1, -1)
    h = jnp.maximum(bn(h, g1, be1), 0.0)
    o = h @ w2 + b2.reshape(1, -1)
    o = jnp.maximum(bn(o, g2, be2), 0.0)
    return o.astype(v.dtype)


if __name__ == "__main__":
    # LayerGIN(input_dim=16, hidden_dim=32, output_dim=16), N=128 graph nodes.
    N, D_IN, H, D_OUT = 128, 16, 32, 16

    key = jax.random.PRNGKey(0)
    ks = jax.random.split(key, 10)
    v = jax.random.normal(ks[0], (N, D_IN), jnp.float32)
    # 0/1 adjacency standing in for the sparse matrix of torch.sparse.mm
    a = (jax.random.uniform(ks[1], (N, N), jnp.float32) > 0.8).astype(jnp.float32)
    epsilon = jnp.array([[0.25]], jnp.float32)          # nn.Parameter([[0.0]]) shape

    w1 = jax.random.normal(ks[2], (D_IN, H), jnp.float32) * 0.1
    b1 = jax.random.normal(ks[3], (H,), jnp.float32) * 0.1
    gamma1 = 1.0 + 0.1 * jax.random.normal(ks[4], (H,), jnp.float32)
    beta1 = 0.1 * jax.random.normal(ks[5], (H,), jnp.float32)

    w2 = jax.random.normal(ks[6], (H, D_OUT), jnp.float32) * 0.1
    b2 = jax.random.normal(ks[7], (D_OUT,), jnp.float32) * 0.1
    gamma2 = 1.0 + 0.1 * jax.random.normal(ks[8], (D_OUT,), jnp.float32)
    beta2 = 0.1 * jax.random.normal(ks[9], (D_OUT,), jnp.float32)

    out = layer_gin_forward(v, a, epsilon, w1, b1, gamma1, beta1,
                            w2, b2, gamma2, beta2, bn_eps=1e-5, row_tile=64)
    out = jax.block_until_ready(out)

    ref = _reference_gin(v, a, epsilon, w1, b1, gamma1, beta1,
                         w2, b2, gamma2, beta2, bn_eps=1e-5)
    assert out.shape == (N, D_OUT) and out.dtype == v.dtype
    assert jnp.max(jnp.abs(out - ref)) < 1e-3, "mismatch vs reference"

    print("KERNEL_OK")
</pallas_src>

<mosaic_0001>
module attributes {stable_mosaic.version = 11 : i64} {
  func.func @_stage1_kernel(%arg0: i32, %arg1: memref<64x128xf32, #tpu.memory_space<vmem>>, %arg2: memref<128x16xf32, #tpu.memory_space<vmem>>, %arg3: memref<64x16xf32, #tpu.memory_space<vmem>>, %arg4: memref<1x1xf32, #tpu.memory_space<smem>>, %arg5: memref<16x32xf32, #tpu.memory_space<vmem>>, %arg6: memref<1x32xf32, #tpu.memory_space<vmem>>, %arg7: memref<64x32xf32, #tpu.memory_space<vmem>>, %arg8: memref<1x32xf32, #tpu.memory_space<vmem>>, %arg9: memref<1x32xf32, #tpu.memory_space<vmem>>) attributes {dimension_semantics = [#tpu.dimension_semantics<arbitrary>], iteration_bounds = array<i64: 2>, scalar_prefetch = 0 : i64, scratch_operands = 0 : i64, tpu.core_type = #tpu.core_type<tc>, window_params = [{transform_indices = @transform_0, window_bounds = array<i64: 64, 128>}, {pipeline_mode = #tpu.pipeline_mode<synchronous>, transform_indices = @transform_1, window_bounds = array<i64: 128, 16>}, {transform_indices = @transform_2, window_bounds = array<i64: 64, 16>}, {transform_indices = @transform_3, window_bounds = array<i64: 1, 1>}, {pipeline_mode = #tpu.pipeline_mode<synchronous>, transform_indices = @transform_4, window_bounds = array<i64: 16, 32>}, {pipeline_mode = #tpu.pipeline_mode<synchronous>, transform_indices = @transform_5, window_bounds = array<i64: 1, 32>}, {transform_indices = @transform_6, window_bounds = array<i64: 64, 32>}, {pipeline_mode = #tpu.pipeline_mode<synchronous>, transform_indices = @transform_7, window_bounds = array<i64: 1, 32>}, {pipeline_mode = #tpu.pipeline_mode<synchronous>, transform_indices = @transform_8, window_bounds = array<i64: 1, 32>}]} {
    %c0 = arith.constant 0 : index
    %c0_0 = arith.constant 0 : index
    %0 = vector.load %arg1[%c0, %c0_0] : memref<64x128xf32, #tpu.memory_space<vmem>>, vector<64x128xf32>
    %c0_1 = arith.constant 0 : index
    %c0_2 = arith.constant 0 : index
    %1 = vector.load %arg2[%c0_1, %c0_2] : memref<128x16xf32, #tpu.memory_space<vmem>>, vector<128x16xf32>
    %cst = arith.constant dense<0.000000e+00> : vector<64x16xf32>
    %2 = tpu.matmul %0, %1, %cst {dimension_numbers = #tpu.dot_dimension_numbers<[1], [0], [0], [1], [0, 0, 1, 1], [], []>} : vector<64x128xf32>, vector<128x16xf32>, vector<64x16xf32> -> vector<64x16xf32>
    %c0_3 = arith.constant 0 : index
    %c0_4 = arith.constant 0 : index
    %3 = memref.load %arg4[%c0_3, %c0_4] : memref<1x1xf32, #tpu.memory_space<smem>>
    %c0_5 = arith.constant 0 : index
    %c0_6 = arith.constant 0 : index
    %4 = vector.load %arg3[%c0_5, %c0_6] : memref<64x16xf32, #tpu.memory_space<vmem>>, vector<64x16xf32>
    %5 = vector.broadcast %3 : f32 to vector<64x16xf32>
    %6 = arith.mulf %5, %4 : vector<64x16xf32>
    %7 = arith.addf %2, %6 : vector<64x16xf32>
    %c0_7 = arith.constant 0 : index
    %c0_8 = arith.constant 0 : index
    %8 = vector.load %arg5[%c0_7, %c0_8] : memref<16x32xf32, #tpu.memory_space<vmem>>, vector<16x32xf32>
    %cst_9 = arith.constant dense<0.000000e+00> : vector<64x32xf32>
    %9 = tpu.matmul %7, %8, %cst_9 {dimension_numbers = #tpu.dot_dimension_numbers<[1], [0], [0], [1], [0, 0, 1, 1], [], []>} : vector<64x16xf32>, vector<16x32xf32>, vector<64x32xf32> -> vector<64x32xf32>
    %c0_10 = arith.constant 0 : index
    %c0_11 = arith.constant 0 : index
    %10 = vector.load %arg6[%c0_10, %c0_11] : memref<1x32xf32, #tpu.memory_space<vmem>>, vector<1x32xf32>
    %11 = vector.broadcast %10 : vector<1x32xf32> to vector<64x32xf32>
    %12 = arith.addf %9, %11 : vector<64x32xf32>
    %c0_12 = arith.constant 0 : index
    %c0_13 = arith.constant 0 : index
    %13 = vector.load %arg7[%c0_12, %c0_13] : memref<64x32xf32, #tpu.memory_space<vmem>>, vector<64x32xf32>
    tpu.vector_store %arg7[%c0_12, %c0_13], %12 {strides = array<i32>} : memref<64x32xf32, #tpu.memory_space<vmem>>, vector<64x32xf32>,
    %c0_i32 = arith.constant 0 : i32
    %14 = arith.cmpi eq, %arg0, %c0_i32 : i32
    %15 = arith.extui %14 : i1 to i32
    %c0_i32_14 = arith.constant 0 : i32
    %16 = arith.cmpi ne, %15, %c0_i32_14 : i32
    scf.if %16 {
      %cst_25 = arith.constant 0.000000e+00 : f32
      %28 = vector.broadcast %cst_25 : f32 to vector<1x32xf32>
      %c0_26 = arith.constant 0 : index
      %c0_27 = arith.constant 0 : index
      %29 = vector.load %arg8[%c0_26, %c0_27] : memref<1x32xf32, #tpu.memory_space<vmem>>, vector<1x32xf32>
      tpu.vector_store %arg8[%c0_26, %c0_27], %28 {strides = array<i32>} : memref<1x32xf32, #tpu.memory_space<vmem>>, vector<1x32xf32>,
      %cst_28 = arith.constant 0.000000e+00 : f32
      %30 = vector.broadcast %cst_28 : f32 to vector<1x32xf32>
      %c0_29 = arith.constant 0 : index
      %c0_30 = arith.constant 0 : index
      %31 = vector.load %arg9[%c0_29, %c0_30] : memref<1x32xf32, #tpu.memory_space<vmem>>, vector<1x32xf32>
      tpu.vector_store %arg9[%c0_29, %c0_30], %30 {strides = array<i32>} : memref<1x32xf32, #tpu.memory_space<vmem>>, vector<1x32xf32>,
    } else {
    }
    %c0_15 = arith.constant 0 : index
    %c0_16 = arith.constant 0 : index
    %17 = vector.load %arg8[%c0_15, %c0_16] : memref<1x32xf32, #tpu.memory_space<vmem>>, vector<1x32xf32>
    %cst_17 = arith.constant dense<0.000000e+00> : vector<32xf32>
    %18 = vector.multi_reduction <add>, %12, %cst_17 [0] : vector<64x32xf32> to vector<32xf32>
    %19 = vector.shape_cast %18 : vector<32xf32> to vector<1x32xf32>
    %20 = arith.addf %17, %19 : vector<1x32xf32>
    %c0_18 = arith.constant 0 : index
    %c0_19 = arith.constant 0 : index
    %21 = vector.load %arg8[%c0_18, %c0_19] : memref<1x32xf32, #tpu.memory_space<vmem>>, vector<1x32xf32>
    tpu.vector_store %arg8[%c0_18, %c0_19], %20 {strides = array<i32>} : memref<1x32xf32, #tpu.memory_space<vmem>>, vector<1x32xf32>,
    %c0_20 = arith.constant 0 : index
    %c0_21 = arith.constant 0 : index
    %22 = vector.load %arg9[%c0_20, %c0_21] : memref<1x32xf32, #tpu.memory_space<vmem>>, vector<1x32xf32>
    %23 = arith.mulf %12, %12 : vector<64x32xf32>
    %cst_22 = arith.constant dense<0.000000e+00> : vector<32xf32>
    %24 = vector.multi_reduction <add>, %23, %cst_22 [0] : vector<64x32xf32> to vector<32xf32>
    %25 = vector.shape_cast %24 : vector<32xf32> to vector<1x32xf32>
    %26 = arith.addf %22, %25 : vector<1x32xf32>
    %c0_23 = arith.constant 0 : index
    %c0_24 = arith.constant 0 : index
    %27 = vector.load %arg9[%c0_23, %c0_24] : memref<1x32xf32, #tpu.memory_space<vmem>>, vector<1x32xf32>
    tpu.vector_store %arg9[%c0_23, %c0_24], %26 {strides = array<i32>} : memref<1x32xf32, #tpu.memory_space<vmem>>, vector<1x32xf32>,
    return
  }
  func.func @transform_0(%arg0: i32) -> (i32, i32) {
    %c0_i32 = arith.constant 0 : i32
    %c0_i32_0 = arith.constant 0 : i32
    return %arg0, %c0_i32 : i32, i32
  }
  func.func @transform_1(%arg0: i32) -> (i32, i32) {
    %c0_i32 = arith.constant 0 : i32
    %c0_i32_0 = arith.constant 0 : i32
    %c0_i32_1 = arith.constant 0 : i32
    return %c0_i32, %c0_i32_0 : i32, i32
  }
  func.func @transform_2(%arg0: i32) -> (i32, i32) {
    %c0_i32 = arith.constant 0 : i32
    %c0_i32_0 = arith.constant 0 : i32
    return %arg0, %c0_i32 : i32, i32
  }
  func.func @transform_3(%arg0: i32) -> (i32, i32) {
    %c0_i32 = arith.constant 0 : i32
    %c0_i32_0 = arith.constant 0 : i32
    %c0_i32_1 = arith.constant 0 : i32
    return %c0_i32, %c0_i32_0 : i32, i32
  }
  func.func @transform_4(%arg0: i32) -> (i32, i32) {
    %c0_i32 = arith.constant 0 : i32
    %c0_i32_0 = arith.constant 0 : i32
    %c0_i32_1 = arith.constant 0 : i32
    return %c0_i32, %c0_i32_0 : i32, i32
  }
  func.func @transform_5(%arg0: i32) -> (i32, i32) {
    %c0_i32 = arith.constant 0 : i32
    %c0_i32_0 = arith.constant 0 : i32
    %c0_i32_1 = arith.constant 0 : i32
    return %c0_i32, %c0_i32_0 : i32, i32
  }
  func.func @transform_6(%arg0: i32) -> (i32, i32) {
    %c0_i32 = arith.constant 0 : i32
    %c0_i32_0 = arith.constant 0 : i32
    return %arg0, %c0_i32 : i32, i32
  }
  func.func @transform_7(%arg0: i32) -> (i32, i32) {
    %c0_i32 = arith.constant 0 : i32
    %c0_i32_0 = arith.constant 0 : i32
    %c0_i32_1 = arith.constant 0 : i32
    return %c0_i32, %c0_i32_0 : i32, i32
  }
  func.func @transform_8(%arg0: i32) -> (i32, i32) {
    %c0_i32 = arith.constant 0 : i32
    %c0_i32_0 = arith.constant 0 : i32
    %c0_i32_1 = arith.constant 0 : i32
    return %c0_i32, %c0_i32_0 : i32, i32
  }
}

</mosaic_0001>

<llo_original>
// kernel: tpu_custom_call.1
$region0: #{tpu_custom_call.1}
  #allocation0 [shape = 'u32[]', space=smem, size = 0x4, offset = 0x4, fixed_abs, tag = 'smem constant byte address 0x4 - core index']
  #allocation1 [shape = 'u32[144,128]{1,0:T(1,128)}', space=vmem, size = 0x12000, scoped, tag = 'internal scratch']
  #allocation2 [shape = 'f32[1,1]{1,0:T(1,128)S(6)}', space=smem, size = 0x200, scoped, tag = 'scoped memory for tpu_custom_call.1']
  %s0 = inlined_call_operand.vmem [shape: f32[128,128], index: 0, kind: input, shape index: {}]
  %s1 = inlined_call_operand.vmem [shape: f32[128,16], index: 1, kind: input, shape index: {}]
  %s2 = inlined_call_operand.vmem [shape: f32[128,16], index: 2, kind: input, shape index: {}]
  %s3 = inlined_call_operand.<no memory space> [shape: f32[1,1], index: 3, kind: input, shape index: {}]
  %s4 = inlined_call_operand.vmem [shape: f32[16,32], index: 4, kind: input, shape index: {}]
  %s5 = inlined_call_operand.vmem [shape: f32[1,32], index: 5, kind: input, shape index: {}]
  %s6 = inlined_call_operand.vmem [shape: f32[128,32], index: 6, kind: output, shape index: {0}]
  %s7 = inlined_call_operand.hbm [shape: f32[1,32], index: 7, kind: output, shape index: {1}]
  %s8 = inlined_call_operand.hbm [shape: f32[1,32], index: 8, kind: output, shape index: {2}]
  %9 = xla_tuple %s6, %s7, %s8
  %s10 = sld [smem:[#allocation0]]
  $region77: #{tpu_custom_call.1} parent=0
    _
  %s12 = ssub.s32 1, %s10
  %s13 = scalar_select 0, %s12, %s10
  %14 = sst [smem:[#allocation2]] %s3
  $region1: #{tpu_custom_call.1} parent=0
    #allocation3 [shape = 'u8[512]{0}', space=vmem, size = 0x400, scoped, tag = 'output window, operand 1, single buffered']
    #allocation4 [shape = 's32[2]{0}', space=sflag, size = 0x8, scoped, tag = 'scoped memory for tpu_custom_call.1']
    #allocation5 [shape = 'u8[512]{0}', space=vmem, size = 0x400, scoped, tag = 'output window, operand 2, single buffered']
    #allocation6 [shape = 's32[1]{0}', space=sflag, size = 0x4, scoped, tag = 'scoped memory for tpu_custom_call.1']
    %15 = vsyncpa [#allocation4], 0
    %16 = vsyncpa [#allocation6], 0
    loop: start=0, step=1, limit=4
    $region2: #{tpu_custom_call.1} parent=1 // loop_pre_header
      _
    $region3: #{tpu_custom_call.1} parent=1 // loop_header
      %s18 = sphi 0, %s22
      %p19 = scmp.ge.s32.totalorder %s18, 4
      %s28 = sphi 0, %s30
      %s31 = sphi 0, %s28
      %s32 = sphi 0, %s31
      %s48 = sphi 0, %s32
      %s52 = sphi 0, %s52
      %s54 = sphi 0, %s52
      %s55 = sphi 0, %s54
      %s69 = sphi 0, %s55
      %s75 = sphi 0, %s77
      %s78 = sphi 0, %s75
      %s79 = sphi 0, %s78
      %s95 = sphi 0, %s79
      %s99 = sphi 0, %s99
      %s101 = sphi 0, %s99
      %s102 = sphi 0, %s101
      %s116 = sphi 0, %s102
      %s120 = sphi 0, %s120
      %s122 = sphi 0, %s120
      %s123 = sphi 0, %s122
      %s137 = sphi 0, %s123
      %s141 = sphi 0, %s141
      %s143 = sphi 0, %s141
      %s144 = sphi 0, %s143
      %s158 = sphi 0, %s144
      %s164 = sphi 0, %s166
      %s167 = sphi 0, %s164
      %s168 = sphi 0, %s167
      %s184 = sphi 0, %s168
      %s188 = sphi 0, %s188
      %s190 = sphi 0, %s188
      %s191 = sphi 0, %s190
      %s205 = sphi 0, %s191
      %s209 = sphi 0, %s209
      %s211 = sphi 0, %s209
      %s212 = sphi 0, %s211
      %s226 = sphi 0, %s212
    $region4: #{tpu_custom_call.1} parent=1 // loop_header_branch
      %21 = sbr.rel (%p19) target = $region8
    $region5: #{tpu_custom_call.1} parent=1 // loop_body
      %s23 = ssub.s32 %s18, 1
      %s24 = ssub.s32 %s18, 2
      %s25 = sadd.s32 %s18, 1
      %s26 = ssub.s32 %s18, %s25
      %p27 = scmp.eq.s32.totalorder %s26, 0
      %s29 = sadd.s32 %s28, 1
      %s30 = scalar_select %p27, %s28, %s29
      %p33 = pneg %p27
      %p34 = scmp.eq.s32.totalorder %s18, 1
      %p35 = por %p33, %p34
      %p36 = scmp.ne.s32.totalorder %s28, %s31
      %p37 = scmp.eq.s32.totalorder %s18, 0
      %p38 = por %p36, %p37
      %p39 = scmp.ne.s32.totalorder %s28, %s31
      %p40 = scmp.eq.s32.totalorder %s23, 1
      %p41 = por %p39, %p40
      %p42 = scmp.ne.s32.totalorder %s31, %s32
      %p43 = scmp.eq.s32.totalorder %s23, 0
      %p44 = por %p42, %p43
      %p45 = scmp.ne.s32.totalorder %s31, %s32
      %p46 = scmp.eq.s32.totalorder %s24, 1
      %p47 = por %p45, %p46
      %p49 = scmp.ne.s32.totalorder %s32, %s48
      %p50 = scmp.eq.s32.totalorder %s24, 0
      %p51 = por %p49, %p50
      %s53 = sadd.s32 %s52, 1
      %p56 = scmp.eq.s32.totalorder %s18, 1
      %p57 = scmp.ne.s32.totalorder %s52, %s54
      %p58 = scmp.eq.s32.totalorder %s18, 0
      %p59 = por %p57, %p58
      %p60 = scmp.ne.s32.totalorder %s52, %s54
      %p61 = scmp.eq.s32.totalorder %s23, 1
      %p62 = por %p60, %p61
      %p63 = scmp.ne.s32.totalorder %s54, %s55
      %p64 = scmp.eq.s32.totalorder %s23, 0
      %p65 = por %p63, %p64
      %p66 = scmp.ne.s32.totalorder %s54, %s55
      %p67 = scmp.eq.s32.totalorder %s24, 1
      %p68 = por %p66, %p67
      %p70 = scmp.ne.s32.totalorder %s55, %s69
      %p71 = scmp.eq.s32.totalorder %s24, 0
      %p72 = por %p70, %p71
      %s73 = ssub.s32 %s18, %s25
      %p74 = scmp.eq.s32.totalorder %s73, 0
      %s76 = sadd.s32 %s75, 1
      %s77 = scalar_select %p74, %s75, %s76
      %p80 = pneg %p74
      %p81 = scmp.eq.s32.totalorder %s18, 1
      %p82 = por %p80, %p81
      %p83 = scmp.ne.s32.totalorder %s75, %s78
      %p84 = scmp.eq.s32.totalorder %s18, 0
      %p85 = por %p83, %p84
      %p86 = scmp.ne.s32.totalorder %s75, %s78
      %p87 = scmp.eq.s32.totalorder %s23, 1
      %p88 = por %p86, %p87
      %p89 = scmp.ne.s32.totalorder %s78, %s79
      %p90 = scmp.eq.s32.totalorder %s23, 0
      %p91 = por %p89, %p90
      %p92 = scmp.ne.s32.totalorder %s78, %s79
      %p93 = scmp.eq.s32.totalorder %s24, 1
      %p94 = por %p92, %p93
      %p96 = scmp.ne.s32.totalorder %s79, %s95
      %p97 = scmp.eq.s32.totalorder %s24, 0
      %p98 = por %p96, %p97
      %s100 = sadd.s32 %s99, 1
      %p103 = scmp.eq.s32.totalorder %s18, 1
      %p104 = scmp.ne.s32.totalorder %s99, %s101
      %p105 = scmp.eq.s32.totalorder %s18, 0
      %p106 = por %p104, %p105
      %p107 = scmp.ne.s32.totalorder %s99, %s101
      %p108 = scmp.eq.s32.totalorder %s23, 1
      %p109 = por %p107, %p108
      %p110 = scmp.ne.s32.totalorder %s101, %s102
      %p111 = scmp.eq.s32.totalorder %s23, 0
      %p112 = por %p110, %p111
      %p113 = scmp.ne.s32.totalorder %s101, %s102
      %p114 = scmp.eq.s32.totalorder %s24, 1
      %p115 = por %p113, %p114
      %p117 = scmp.ne.s32.totalorder %s102, %s116
      %p118 = scmp.eq.s32.totalorder %s24, 0
      %p119 = por %p117, %p118
      %s121 = sadd.s32 %s120, 1
      %p124 = scmp.eq.s32.totalorder %s18, 1
      %p125 = scmp.ne.s32.totalorder %s120, %s122
      %p126 = scmp.eq.s32.totalorder %s18, 0
      %p127 = por %p125, %p126
      %p128 = scmp.ne.s32.totalorder %s120, %s122
      %p129 = scmp.eq.s32.totalorder %s23, 1
      %p130 = por %p128, %p129
      %p131 = scmp.ne.s32.totalorder %s122, %s123
      %p132 = scmp.eq.s32.totalorder %s23, 0
      %p133 = por %p131, %p132
      %p134 = scmp.ne.s32.totalorder %s122, %s123
      %p135 = scmp.eq.s32.totalorder %s24, 1
      %p136 = por %p134, %p135
      %p138 = scmp.ne.s32.totalorder %s123, %s137
      %p139 = scmp.eq.s32.totalorder %s24, 0
      %p140 = por %p138, %p139
      %s142 = sadd.s32 %s141, 1
      %p145 = scmp.eq.s32.totalorder %s18, 1
      %p146 = scmp.ne.s32.totalorder %s141, %s143
      %p147 = scmp.eq.s32.totalorder %s18, 0
      %p148 = por %p146, %p147
      %p149 = scmp.ne.s32.totalorder %s141, %s143
      %p150 = scmp.eq.s32.totalorder %s23, 1
      %p151 = por %p149, %p150
      %p152 = scmp.ne.s32.totalorder %s143, %s144
      %p153 = scmp.eq.s32.totalorder %s23, 0
      %p154 = por %p152, %p153
      %p155 = scmp.ne.s32.totalorder %s143, %s144
      %p156 = scmp.eq.s32.totalorder %s24, 1
      %p157 = por %p155, %p156
      %p159 = scmp.ne.s32.totalorder %s144, %s158
      %p160 = scmp.eq.s32.totalorder %s24, 0
      %p161 = por %p159, %p160
      %s162 = ssub.s32 %s18, %s25
      %p163 = scmp.eq.s32.totalorder %s162, 0
      %s165 = sadd.s32 %s164, 1
      %s166 = scalar_select %p163, %s164, %s165
      %p169 = pneg %p163
      %p170 = scmp.eq.s32.totalorder %s18, 1
      %p171 = por %p169, %p170
      %p172 = scmp.ne.s32.totalorder %s164, %s167
      %p173 = scmp.eq.s32.totalorder %s18, 0
      %p174 = por %p172, %p173
      %p175 = scmp.ne.s32.totalorder %s164, %s167
      %p176 = scmp.eq.s32.totalorder %s23, 1
      %p177 = por %p175, %p176
      %p178 = scmp.ne.s32.totalorder %s167, %s168
      %p179 = scmp.eq.s32.totalorder %s23, 0
      %p180 = por %p178, %p179
      %p181 = scmp.ne.s32.totalorder %s167, %s168
      %p182 = scmp.eq.s32.totalorder %s24, 1
      %p183 = por %p181, %p182
      %p185 = scmp.ne.s32.totalorder %s168, %s184
      %p186 = scmp.eq.s32.totalorder %s24, 0
      %p187 = por %p185, %p186
      %s189 = sadd.s32 %s188, 1
      %p192 = scmp.eq.s32.totalorder %s18, 1
      %p193 = scmp.ne.s32.totalorder %s188, %s190
      %p194 = scmp.eq.s32.totalorder %s18, 0
      %p195 = por %p193, %p194
      %p196 = scmp.ne.s32.totalorder %s188, %s190
      %p197 = scmp.eq.s32.totalorder %s23, 1
      %p198 = por %p196, %p197
      %p199 = scmp.ne.s32.totalorder %s190, %s191
      %p200 = scmp.eq.s32.totalorder %s23, 0
      %p201 = por %p199, %p200
      %p202 = scmp.ne.s32.totalorder %s190, %s191
      %p203 = scmp.eq.s32.totalorder %s24, 1
      %p204 = por %p202, %p203
      %p206 = scmp.ne.s32.totalorder %s191, %s205
      %p207 = scmp.eq.s32.totalorder %s24, 0
      %p208 = por %p206, %p207
      %s210 = sadd.s32 %s209, 1
      %p213 = scmp.eq.s32.totalorder %s18, 1
      %p214 = scmp.ne.s32.totalorder %s209, %s211
      %p215 = scmp.eq.s32.totalorder %s18, 0
      %p216 = por %p214, %p215
      %p217 = scmp.ne.s32.totalorder %s209, %s211
      %p218 = scmp.eq.s32.totalorder %s23, 1
      %p219 = por %p217, %p218
      %p220 = scmp.ne.s32.totalorder %s211, %s212
      %p221 = scmp.eq.s32.totalorder %s23, 0
      %p222 = por %p220, %p221
      %p223 = scmp.ne.s32.totalorder %s211, %s212
      %p224 = scmp.eq.s32.totalorder %s24, 1
      %p225 = por %p223, %p224
      %p227 = scmp.ne.s32.totalorder %s212, %s226
      %p228 = scmp.eq.s32.totalorder %s24, 0
      %p229 = por %p227, %p228
      %p230 = scmp.le.s32.totalorder 1, %s18
      %p231 = scmp.lt.s32.totalorder %s18, 3
      %p232 = pnand %p230, %p231
      %p233 = pneg %p232
      // Predicated region
      $region9: #{tpu_custom_call.1} parent=5 // pred_check
        _
      $region10: #{tpu_custom_call.1} parent=5 // pred_check_branch
        %235 = sbr.rel (%p232) target = $region12
      $region11: #{tpu_custom_call.1} parent=5 // pred_region
        %s236 = ssub.s32 %s18, 1
        // Predicated region
        $region13: #{tpu_custom_call.1} parent=11 // pred_check
          %p237 = pneg %p65
        $region14: #{tpu_custom_call.1} parent=11 // pred_check_branch
          %239 = sbr.rel (%p237) target = $region16
        $region15: #{tpu_custom_call.1} parent=11 // pred_region
          _
        $region16: #{tpu_custom_call.1} parent=11 // pred_fallthru
          _
        // Predicated region
        $region17: #{tpu_custom_call.1} parent=11 // pred_check
          %p240 = pneg %p112
        $region18: #{tpu_custom_call.1} parent=11 // pred_check_branch
          %242 = sbr.rel (%p240) target = $region20
        $region19: #{tpu_custom_call.1} parent=11 // pred_region
          _
        $region20: #{tpu_custom_call.1} parent=11 // pred_fallthru
          _
        // Predicated region
        $region21: #{tpu_custom_call.1} parent=11 // pred_check
          %p243 = pneg %p133
        $region22: #{tpu_custom_call.1} parent=11 // pred_check_branch
          %245 = sbr.rel (%p243) target = $region24
        $region23: #{tpu_custom_call.1} parent=11 // pred_region
          _
        $region24: #{tpu_custom_call.1} parent=11 // pred_fallthru
          _
        // Predicated region
        $region25: #{tpu_custom_call.1} parent=11 // pred_check
          %p246 = pneg %p154
        $region26: #{tpu_custom_call.1} parent=11 // pred_check_branch
          %248 = sbr.rel (%p246) target = $region28
        $region27: #{tpu_custom_call.1} parent=11 // pred_region
          _
        $region28: #{tpu_custom_call.1} parent=11 // pred_fallthru
          _
      $region12: #{tpu_custom_call.1} parent=5 // pred_fallthru
        _
      %p249 = scmp.lt.s32.totalorder %s18, 2
      // Predicated region
      $region29: #{tpu_custom_call.1} parent=5 // pred_check
        %p250 = pneg %p249
      $region30: #{tpu_custom_call.1} parent=5 // pred_check_branch
        %252 = sbr.rel (%p250) target = $region32
      $region31: #{tpu_custom_call.1} parent=5 // pred_region
        // Predicated region
        $region33: #{tpu_custom_call.1} parent=31 // pred_check
          %p253 = pneg %p38
        $region34: #{tpu_custom_call.1} parent=31 // pred_check_branch
          %255 = sbr.rel (%p253) target = $region36
        $region35: #{tpu_custom_call.1} parent=31 // pred_region
          %s256 = smul.u32 8, %s18
          %p257 = scmp.lt.s32.totalorder %s256, 15
          %s258 = scalar_select %p257, %s256, 15
          %s259 = smul.addr %s258, 8
          %s260 = scalar_lea.vmem %s0, %s259
          %s261 = smul.u32 8, %s18
        $region36: #{tpu_custom_call.1} parent=31 // pred_fallthru
          _
        // Predicated region
        $region37: #{tpu_custom_call.1} parent=31 // pred_check
          %p262 = pneg %p85
        $region38: #{tpu_custom_call.1} parent=31 // pred_check_branch
          %264 = sbr.rel (%p262) target = $region40
        $region39: #{tpu_custom_call.1} parent=31 // pred_region
          %s265 = smul.u32 8, %s18
          %p266 = scmp.lt.s32.totalorder %s265, 15
          %s267 = scalar_select %p266, %s265, 15
          %s268 = smul.addr %s267, 8
          %s269 = scalar_lea.vmem %s2, %s268
          %s270 = smul.u32 8, %s18
        $region40: #{tpu_custom_call.1} parent=31 // pred_fallthru
          _
      $region32: #{tpu_custom_call.1} parent=5 // pred_fallthru
        _
      %p271 = scmp.le.s32.totalorder 1, %s18
      %p272 = scmp.lt.s32.totalorder %s18, 3
      %p273 = pnand %p271, %p272
      %p274 = pneg %p273
      // Predicated region
      $region41: #{tpu_custom_call.1} parent=5 // pred_check
        _
      $region42: #{tpu_custom_call.1} parent=5 // pred_check_branch
        %276 = sbr.rel (%p273) target = $region44
      $region43: #{tpu_custom_call.1} parent=5 // pred_region
        %s277 = ssub.s32 %s18, 1
        %s278 = smul.u32 8, %s23
        %p279 = scmp.lt.s32.totalorder %s278, 15
        %s280 = scalar_select %p279, %s278, 15
        %s281 = smul.addr %s280, 8
        %s282 = scalar_lea.vmem %s0, %s281
        %p283 = pneg %p44
        %p284 = pneg %p41
        %p285 = pneg %p65
        %p286 = pneg %p62
        %s287 = smul.u32 8, %s23
        %p288 = scmp.lt.s32.totalorder %s287, 15
        %s289 = scalar_select %p288, %s287, 15
        %s290 = smul.addr %s289, 8
        %s291 = scalar_lea.vmem %s2, %s290
        %p292 = pneg %p91
        %p293 = pneg %p88
        %p294 = pneg %p112
        %p295 = pneg %p109
        %p296 = pneg %p133
        %p297 = pneg %p130
        %p298 = pneg %p154
        %p299 = pneg %p151
        %p300 = pneg %p180
        %p301 = pneg %p177
        %s302 = smul.u32 8, %s23
        %p303 = scmp.lt.s32.totalorder %s302, 15
        %s304 = scalar_select %p303, %s302, 15
        %s305 = smul.addr %s304, 8
        %s306 = scalar_lea.vmem %s6, %s305
        %p307 = pneg %p201
        %p308 = pneg %p198
        %p309 = pneg %p222
        %p310 = pneg %p219
        %s311 = smul.u32 8, %s23
        %p312 = scmp.lt.s32.totalorder %s311, 15
        %s313 = scalar_select %p312, %s311, 15
        %s314 = smul.addr %s313, 8
        %s315 = scalar_lea.vmem %s0, %s314
        %s316 = smul.u32 8, %s23
        %s317 = smul.u32 8, %s23
        %p318 = scmp.lt.s32.totalorder %s317, 15
        %s319 = scalar_select %p318, %s317, 15
        %s320 = smul.addr %s319, 8
        %s321 = scalar_lea.vmem %s2, %s320
        %s322 = smul.u32 8, %s23
        %s323 = smul.u32 8, %s23
        %p324 = scmp.lt.s32.totalorder %s323, 15
        %s325 = scalar_select %p324, %s323, 15
        %s326 = smul.addr %s325, 8
        %s327 = scalar_lea.vmem %s6, %s326
        %s328 = smul.u32 8, %s23
        %v329 = vld [vmem:[%s315] sm:$0xff]
        %v330 = vld [vmem:[%s315 + $0x8] sm:$0xff]
        %v331 = vld [vmem:[%s315 + $0x10] sm:$0xff]
        %v332 = vld [vmem:[%s315 + $0x18] sm:$0xff]
        %v333 = vld [vmem:[%s315 + $0x20] sm:$0xff]
        %v334 = vld [vmem:[%s315 + $0x28] sm:$0xff]
        %v335 = vld [vmem:[%s315 + $0x30] sm:$0xff]
        %v336 = vld [vmem:[%s315 + $0x38] sm:$0xff]
        %v337 = vld [vmem:[%s1] sm:$0xff]
        %v338 = vld [vmem:[%s1 + $0x8] sm:$0xff]
        %v339 = vld [vmem:[%s1 + $0x10] sm:$0xff]
        %v340 = vld [vmem:[%s1 + $0x18] sm:$0xff]
        %v341 = vld [vmem:[%s1 + $0x20] sm:$0xff]
        %v342 = vld [vmem:[%s1 + $0x28] sm:$0xff]
        %v343 = vld [vmem:[%s1 + $0x30] sm:$0xff]
        %v344 = vld [vmem:[%s1 + $0x38] sm:$0xff]
        %v345 = vld [vmem:[%s1 + $0x40] sm:$0xff]
        %v346 = vld [vmem:[%s1 + $0x48] sm:$0xff]
        %v347 = vld [vmem:[%s1 + $0x50] sm:$0xff]
        %v348 = vld [vmem:[%s1 + $0x58] sm:$0xff]
        %v349 = vld [vmem:[%s1 + $0x60] sm:$0xff]
        %v350 = vld [vmem:[%s1 + $0x68] sm:$0xff]
        %v351 = vld [vmem:[%s1 + $0x70] sm:$0xff]
        %v352 = vld [vmem:[%s1 + $0x78] sm:$0xff]
        %s353 = sld [smem:[#allocation2]]
        %v354 = vld [vmem:[%s321] sm:$0xff]
        %v355 = vld [vmem:[%s321 + $0x8] sm:$0xff]
        %v356 = vld [vmem:[%s321 + $0x10] sm:$0xff]
        %v357 = vld [vmem:[%s321 + $0x18] sm:$0xff]
        %v358 = vld [vmem:[%s321 + $0x20] sm:$0xff]
        %v359 = vld [vmem:[%s321 + $0x28] sm:$0xff]
        %v360 = vld [vmem:[%s321 + $0x30] sm:$0xff]
        %v361 = vld [vmem:[%s321 + $0x38] sm:$0xff]
        %v362 = vstv %s353
        %v363 = vmul.f32 %v362, %v354
        %v364 = vmul.f32 %v362, %v355
        %v365 = vmul.f32 %v362, %v356
        %v366 = vmul.f32 %v362, %v357
        %v367 = vmul.f32 %v362, %v358
        %v368 = vmul.f32 %v362, %v359
        %v369 = vmul.f32 %v362, %v360
        %v370 = vmul.f32 %v362, %v361
        %371 = vmatprep.subr.mxu0 0.0
        %372 = vmatpush1.msra.mxu0 %v337
        %373 = vmatprep.subr.mxu0 0.0
        %374 = vmatpush1.msra.mxu0 %v338
        %375 = vmatprep.subr.mxu0 0.0
        %376 = vmatpush1.msra.mxu0 %v339
        %377 = vmatprep.subr.mxu0 0.0
        %378 = vmatpush1.msra.mxu0 %v340
        %379 = vmatprep.subr.mxu0 0.0
        %380 = vmatpush1.msra.mxu0 %v341
        %381 = vmatprep.subr.mxu0 0.0
        %382 = vmatpush1.msra.mxu0 %v342
        %383 = vmatprep.subr.mxu0 0.0
        %384 = vmatpush1.msra.mxu0 %v343
        %385 = vmatprep.subr.mxu0 0.0
        %386 = vmatpush1.msra.mxu0 %v344
        %387 = vmatprep.subr.mxu0 0.0
        %388 = vmatpush1.msra.mxu0 %v345
        %389 = vmatprep.subr.mxu0 0.0
        %390 = vmatpush1.msra.mxu0 %v346
        %391 = vmatprep.subr.mxu0 0.0
        %392 = vmatpush1.msra.mxu0 %v347
        %393 = vmatprep.subr.mxu0 0.0
        %394 = vmatpush1.msra.mxu0 %v348
        %395 = vmatprep.subr.mxu0 0.0
        %396 = vmatpush1.msra.mxu0 %v349
        %397 = vmatprep.subr.mxu0 0.0
        %398 = vmatpush1.msra.mxu0 %v350
        %399 = vmatprep.subr.mxu0 0.0
        %400 = vmatpush1.msra.mxu0 %v351
        %401 = vmatprep.subr.mxu0 0.0
        %402 = vmatpush1.msra.mxu0 %v352
        %403 = vmatprep.subr.mxu0 0.0
        %404 = vmatpush1.msra.mxu0 0.0
        %405 = vmatprep.subr.mxu0 0.0
        %406 = vmatpush1.msra.mxu0 0.0
        %407 = vmatprep.subr.mxu0 0.0
        %408 = vmatpush1.msra.mxu0 0.0
        %409 = vmatprep.subr.mxu0 0.0
        %410 = vmatpush1.msra.mxu0 0.0
        %411 = vmatprep.subr.mxu0 0.0
        %412 = vmatpush1.msra.mxu0 0.0
        %413 = vmatprep.subr.mxu0 0.0
        %414 = vmatpush1.msra.mxu0 0.0
        %415 = vmatprep.subr.mxu0 0.0
        %416 = vmatpush1.msra.mxu0 0.0
        %417 = vmatprep.subr.mxu0 0.0
        %418 = vmatpush1.msra.mxu0 0.0
        %419 = vmatprep.subr.mxu0 0.0
        %420 = vmatpush1.msra.mxu0 0.0
        %421 = vmatprep.subr.mxu0 0.0
        %422 = vmatpush1.msra.mxu0 0.0
        %423 = vmatprep.subr.mxu0 0.0
        %424 = vmatpush1.msra.mxu0 0.0
        %425 = vmatprep.subr.mxu0 0.0
        %426 = vmatpush1.msra.mxu0 0.0
        %427 = vmatprep.subr.mxu0 0.0
        %428 = vmatpush1.msra.mxu0 0.0
        %429 = vmatprep.subr.mxu0 0.0
        %430 = vmatpush1.msra.mxu0 0.0
        %431 = vmatprep.subr.mxu0 0.0
        %432 = vmatpush1.msra.mxu0 0.0
        %433 = vmatprep.subr.mxu0 0.0
        %434 = vmatpush1.msra.mxu0 0.0
        %435 = vmatprep.mubr.f32.mxu0 0.0
        %436 = vmatmul.mubr.f32.gmra.mrb[0].mxu0 %v329
        %v437 = vpop.f32.mrb[0].mxu0
        %v438 = vadd.f32 %v363, %v437
        %v439 = vpop.f32.mrb[0].mxu0
        %440 = vmatprep.mubr.f32.mxu0 0.0
        %441 = vmatmul.mubr.f32.gmra.mrb[0].mxu0 %v330
        %v442 = vpop.f32.mrb[0].mxu0
        %v443 = vadd.f32 %v364, %v442
        %v444 = vpop.f32.mrb[0].mxu0
        %445 = vmatprep.mubr.f32.mxu0 0.0
        %446 = vmatmul.mubr.f32.gmra.mrb[0].mxu0 %v331
        %v447 = vpop.f32.mrb[0].mxu0
        %v448 = vadd.f32 %v365, %v447
        %v449 = vpop.f32.mrb[0].mxu0
        %450 = vmatprep.mubr.f32.mxu0 0.0
        %451 = vmatmul.mubr.f32.gmra.mrb[0].mxu0 %v332
        %v452 = vpop.f32.mrb[0].mxu0
        %v453 = vadd.f32 %v366, %v452
        %v454 = vpop.f32.mrb[0].mxu0
        %455 = vmatprep.mubr.f32.mxu0 0.0
        %456 = vmatmul.mubr.f32.gmra.mrb[0].mxu0 %v333
        %v457 = vpop.f32.mrb[0].mxu0
        %v458 = vadd.f32 %v367, %v457
        %v459 = vpop.f32.mrb[0].mxu0
        %460 = vmatprep.mubr.f32.mxu0 0.0
        %461 = vmatmul.mubr.f32.gmra.mrb[0].mxu0 %v334
        %v462 = vpop.f32.mrb[0].mxu0
        %v463 = vadd.f32 %v368, %v462
        %v464 = vpop.f32.mrb[0].mxu0
        %465 = vmatprep.mubr.f32.mxu0 0.0
        %466 = vmatmul.mubr.f32.gmra.mrb[0].mxu0 %v335
        %v467 = vpop.f32.mrb[0].mxu0
        %v468 = vadd.f32 %v369, %v467
        %v469 = vpop.f32.mrb[0].mxu0
        %470 = vmatprep.mubr.f32.mxu0 0.0
        %471 = vmatmul.mubr.f32.gmra.mrb[0].mxu0 %v336
        %v472 = vpop.f32.mrb[0].mxu0
        %v473 = vadd.f32 %v370, %v472
        %v474 = vpop.f32.mrb[0].mxu0
        %475 = vdwg.mxu0
        %v476 = vld [vmem:[%s4] sm:$0xff]
        %v477 = vld [vmem:[%s4 + $0x8] sm:$0xff]
        %v478 = vld [vmem:[%s5] sm:$0x1]
        %v480 = vlaneseq
        %v481 = vshrl.u32 %v480, 7
        %v482 = vsub.s32 0, %v481
        %v483 = vrot.slane %v478, %v482
        %vm485 = vcmask 130048
        %v487 = vsel %vm485, %v438, 0
        %v490 = vsel %vm485, %v443, 0
        %v493 = vsel %vm485, %v448, 0
        %v496 = vsel %vm485, %v453, 0
        %v499 = vsel %vm485, %v458, 0
        %v502 = vsel %vm485, %v463, 0
        %v505 = vsel %vm485, %v468, 0
        %v508 = vsel %vm485, %v473, 0
        %510 = vmatprep.subr.mxu0 0.0
        %511 = vmatpush1.msra.mxu0 %v476
        %512 = vmatprep.subr.mxu0 0.0
        %513 = vmatpush1.msra.mxu0 %v477
        %514 = vmatprep.subr.mxu0 0.0
        %515 = vmatpush1.msra.mxu0 0.0
        %516 = vmatprep.subr.mxu0 0.0
        %517 = vmatpush1.msra.mxu0 0.0
        %518 = vmatprep.subr.mxu0 0.0
        %519 = vmatpush1.msra.mxu0 0.0
        %520 = vmatprep.subr.mxu0 0.0
        %521 = vmatpush1.msra.mxu0 0.0
        %522 = vmatprep.subr.mxu0 0.0
        %523 = vmatpush1.msra.mxu0 0.0
        %524 = vmatprep.subr.mxu0 0.0
        %525 = vmatpush1.msra.mxu0 0.0
        %526 = vmatprep.subr.mxu0 0.0
        %527 = vmatpush1.msra.mxu0 0.0
        %528 = vmatprep.subr.mxu0 0.0
        %529 = vmatpush1.msra.mxu0 0.0
        %530 = vmatprep.subr.mxu0 0.0
        %531 = vmatpush1.msra.mxu0 0.0
        %532 = vmatprep.subr.mxu0 0.0
        %533 = vmatpush1.msra.mxu0 0.0
        %534 = vmatprep.subr.mxu0 0.0
        %535 = vmatpush1.msra.mxu0 0.0
        %536 = vmatprep.subr.mxu0 0.0
        %537 = vmatpush1.msra.mxu0 0.0
        %538 = vmatprep.subr.mxu0 0.0
        %539 = vmatpush1.msra.mxu0 0.0
        %540 = vmatprep.subr.mxu0 0.0
        %541 = vmatpush1.msra.mxu0 0.0
        %542 = vmatprep.subr.mxu0 0.0
        %543 = vmatpush1.msra.mxu0 0.0
        %544 = vmatprep.subr.mxu0 0.0
        %545 = vmatpush1.msra.mxu0 0.0
        %546 = vmatprep.subr.mxu0 0.0
        %547 = vmatpush1.msra.mxu0 0.0
        %548 = vmatprep.subr.mxu0 0.0
        %549 = vmatpush1.msra.mxu0 0.0
        %550 = vmatprep.subr.mxu0 0.0
        %551 = vmatpush1.msra.mxu0 0.0
        %552 = vmatprep.subr.mxu0 0.0
        %553 = vmatpush1.msra.mxu0 0.0
        %554 = vmatprep.subr.mxu0 0.0
        %555 = vmatpush1.msra.mxu0 0.0
        %556 = vmatprep.subr.mxu0 0.0
        %557 = vmatpush1.msra.mxu0 0.0
        %558 = vmatprep.subr.mxu0 0.0
        %559 = vmatpush1.msra.mxu0 0.0
        %560 = vmatprep.subr.mxu0 0.0
        %561 = vmatpush1.msra.mxu0 0.0
        %562 = vmatprep.subr.mxu0 0.0
        %563 = vmatpush1.msra.mxu0 0.0
        %564 = vmatprep.subr.mxu0 0.0
        %565 = vmatpush1.msra.mxu0 0.0
        %566 = vmatprep.subr.mxu0 0.0
        %567 = vmatpush1.msra.mxu0 0.0
        %568 = vmatprep.subr.mxu0 0.0
        %569 = vmatpush1.msra.mxu0 0.0
        %570 = vmatprep.subr.mxu0 0.0
        %571 = vmatpush1.msra.mxu0 0.0
        %572 = vmatprep.subr.mxu0 0.0
        %573 = vmatpush1.msra.mxu0 0.0
        %574 = vmatprep.mubr.f32.mxu0 0.0
        %575 = vmatmul.mubr.f32.gmra.mrb[0].mxu0 %v487
        %v576 = vpop.f32.mrb[0].mxu0
        %v577 = vadd.f32 %v483, %v576
        %v578 = vpop.f32.mrb[0].mxu0
        %579 = vmatprep.mubr.f32.mxu0 0.0
        %580 = vmatmul.mubr.f32.gmra.mrb[0].mxu0 %v490
        %v581 = vpop.f32.mrb[0].mxu0
        %v582 = vadd.f32 %v483, %v581
        %v583 = vpop.f32.mrb[0].mxu0
        %584 = vmatprep.mubr.f32.mxu0 0.0
        %585 = vmatmul.mubr.f32.gmra.mrb[0].mxu0 %v493
        %v586 = vpop.f32.mrb[0].mxu0
        %v587 = vadd.f32 %v483, %v586
        %v588 = vpop.f32.mrb[0].mxu0
        %589 = vmatprep.mubr.f32.mxu0 0.0
        %590 = vmatmul.mubr.f32.gmra.mrb[0].mxu0 %v496
        %v591 = vpop.f32.mrb[0].mxu0
        %v592 = vadd.f32 %v483, %v591
        %v593 = vpop.f32.mrb[0].mxu0
        %594 = vmatprep.mubr.f32.mxu0 0.0
        %595 = vmatmul.mubr.f32.gmra.mrb[0].mxu0 %v499
        %v596 = vpop.f32.mrb[0].mxu0
        %v597 = vadd.f32 %v483, %v596
        %v598 = vpop.f32.mrb[0].mxu0
        %599 = vmatprep.mubr.f32.mxu0 0.0
        %600 = vmatmul.mubr.f32.gmra.mrb[0].mxu0 %v502
        %v601 = vpop.f32.mrb[0].mxu0
        %v602 = vadd.f32 %v483, %v601
        %v603 = vpop.f32.mrb[0].mxu0
        %604 = vmatprep.mubr.f32.mxu0 0.0
        %605 = vmatmul.mubr.f32.gmra.mrb[0].mxu0 %v505
        %v606 = vpop.f32.mrb[0].mxu0
        %v607 = vadd.f32 %v483, %v606
        %v608 = vpop.f32.mrb[0].mxu0
        %609 = vmatprep.mubr.f32.mxu0 0.0
        %610 = vmatmul.mubr.f32.gmra.mrb[0].mxu0 %v508
        %v611 = vpop.f32.mrb[0].mxu0
        %v612 = vadd.f32 %v483, %v611
        %v613 = vpop.f32.mrb[0].mxu0
        %614 = vdwg.mxu0
        %vm615 = vcmask 261120
        %616 = vst.msk [vmem:[%s327] sm:$0xff] %vm615, %v577
        %617 = vst.msk [vmem:[%s327 + $0x8] sm:$0xff] %vm615, %v582
        %618 = vst.msk [vmem:[%s327 + $0x10] sm:$0xff] %vm615, %v587
        %619 = vst.msk [vmem:[%s327 + $0x18] sm:$0xff] %vm615, %v592
        %620 = vst.msk [vmem:[%s327 + $0x20] sm:$0xff] %vm615, %v597
        %621 = vst.msk [vmem:[%s327 + $0x28] sm:$0xff] %vm615, %v602
        %622 = vst.msk [vmem:[%s327 + $0x30] sm:$0xff] %vm615, %v607
        %623 = vst.msk [vmem:[%s327 + $0x38] sm:$0xff] %vm615, %v612
        %p624 = scmp.eq.s32.totalorder %s23, 0
        // Predicated region
        $region45: #{tpu_custom_call.1} parent=43 // pred_check
          %p625 = pneg %p624
        $region46: #{tpu_custom_call.1} parent=43 // pred_check_branch
          %627 = sbr.rel (%p625) target = $region48
        $region47: #{tpu_custom_call.1} parent=43 // pred_region
          %vm628 = vcmask 253952
          %629 = vst.msk [vmem:[#allocation3] sm:$0x1] %vm628, 0.0
          %630 = vst.msk [vmem:[#allocation5] sm:$0x1] %vm628, 0.0
        $region48: #{tpu_custom_call.1} parent=43 // pred_fallthru
          _
        %v631 = vld [vmem:[#allocation3] sm:$0x1]
        %v632 = vsel %vm615, %v577, 0.0
        %v633 = vsel %vm615, %v582, 0.0
        %v634 = vadd.f32 %v632, %v633
        %v635 = vsel %vm615, %v587, 0.0
        %v636 = vadd.f32 %v634, %v635
        %v637 = vsel %vm615, %v592, 0.0
        %v638 = vadd.f32 %v636, %v637
        %v639 = vsel %vm615, %v597, 0.0
        %v640 = vadd.f32 %v638, %v639
        %v641 = vsel %vm615, %v602, 0.0
        %v642 = vadd.f32 %v640, %v641
        %v643 = vsel %vm615, %v607, 0.0
        %v644 = vadd.f32 %v642, %v643
        %v645 = vsel %vm615, %v612, 0.0
        %v646 = vadd.f32 %v644, %v645
        %v647 = vrot.slane %v646, 4
        %v648 = vadd.f32 %v646, %v647
        %v649 = vrot.slane %v648, 2
        %v650 = vadd.f32 %v648, %v649
        %v651 = vrot.slane %v650, 1
        %v652 = vadd.f32 %v650, %v651
        %v653 = vadd.f32 %v631, %v652
        %vm654 = vcmask 253952
        %655 = vst.msk [vmem:[#allocation3] sm:$0x1] %vm654, %v653
        %v656 = vld [vmem:[#allocation5] sm:$0x1]
        %v657 = vmul.f32 %v577, %v577
        %v658 = vmul.f32 %v582, %v582
        %v659 = vmul.f32 %v587, %v587
        %v660 = vmul.f32 %v592, %v592
        %v661 = vmul.f32 %v597, %v597
        %v662 = vmul.f32 %v602, %v602
        %v663 = vmul.f32 %v607, %v607
        %v664 = vmul.f32 %v612, %v612
        %v665 = vsel %vm615, %v657, 0.0
        %v666 = vsel %vm615, %v658, 0.0
        %v667 = vadd.f32 %v665, %v666
        %v668 = vsel %vm615, %v659, 0.0
        %v669 = vadd.f32 %v667, %v668
        %v670 = vsel %vm615, %v660, 0.0
        %v671 = vadd.f32 %v669, %v670
        %v672 = vsel %vm615, %v661, 0.0
        %v673 = vadd.f32 %v671, %v672
        %v674 = vsel %vm615, %v662, 0.0
        %v675 = vadd.f32 %v673, %v674
        %v676 = vsel %vm615, %v663, 0.0
        %v677 = vadd.f32 %v675, %v676
        %v678 = vsel %vm615, %v664, 0.0
        %v679 = vadd.f32 %v677, %v678
        %v680 = vrot.slane %v679, 4
        %v681 = vadd.f32 %v679, %v680
        %v682 = vrot.slane %v681, 2
        %v683 = vadd.f32 %v681, %v682
        %v684 = vrot.slane %v683, 1
        %v685 = vadd.f32 %v683, %v684
        %v686 = vadd.f32 %v656, %v685
        %687 = vst.msk [vmem:[#allocation5] sm:$0x1] %vm654, %v686
        %s688 = smul.u32 8, %s23
        %p689 = scmp.lt.s32.totalorder %s688, 15
        %s690 = scalar_select %p689, %s688, 15
        %s691 = smul.addr %s690, 8
        %s692 = scalar_lea.vmem %s6, %s691
        // Predicated region
        $region49: #{tpu_custom_call.1} parent=43 // pred_check
          %p693 = pneg %p177
        $region50: #{tpu_custom_call.1} parent=43 // pred_check_branch
          %695 = sbr.rel (%p693) target = $region52
        $region51: #{tpu_custom_call.1} parent=43 // pred_region
          %s696 = smul.u32 8, %s23
        $region52: #{tpu_custom_call.1} parent=43 // pred_fallthru
          _
        // Predicated region
        $region53: #{tpu_custom_call.1} parent=43 // pred_check
          %p697 = pneg %p198
        $region54: #{tpu_custom_call.1} parent=43 // pred_check_branch
          %699 = sbr.rel (%p697) target = $region56
        $region55: #{tpu_custom_call.1} parent=43 // pred_region
          %s701 = ssub.s32 16, 16
          %702 = vsyncadd [#allocation4], %s701
          %s704 = sshll.u32 [#allocation3], 4
          %s705 = int_to_ptr.vmem [resolvable:$true] %s704
          %707 = dma.vmem_to_hbm [thread:$0]  %s705, 16, %s7, [#allocation4]
        $region56: #{tpu_custom_call.1} parent=43 // pred_fallthru
          _
        // Predicated region
        $region57: #{tpu_custom_call.1} parent=43 // pred_check
          %p708 = pneg %p219
        $region58: #{tpu_custom_call.1} parent=43 // pred_check_branch
          %710 = sbr.rel (%p708) target = $region60
        $region59: #{tpu_custom_call.1} parent=43 // pred_region
          %s712 = ssub.s32 16, 16
          %713 = vsyncadd [#allocation6], %s712
          %s715 = sshll.u32 [#allocation5], 4
          %s716 = int_to_ptr.vmem [resolvable:$true] %s715
          %718 = dma.vmem_to_hbm [thread:$0]  %s716, 16, %s8, [#allocation6]
        $region60: #{tpu_custom_call.1} parent=43 // pred_fallthru
          _
        // Predicated region
        $region61: #{tpu_custom_call.1} parent=43 // pred_check
          %p719 = pneg %p198
        $region62: #{tpu_custom_call.1} parent=43 // pred_check_branch
          %721 = sbr.rel (%p719) target = $region64
        $region63: #{tpu_custom_call.1} parent=43 // pred_region
          %722 = dma.done [#allocation4], 16
        $region64: #{tpu_custom_call.1} parent=43 // pred_fallthru
          _
        // Predicated region
        $region65: #{tpu_custom_call.1} parent=43 // pred_check
          %p723 = pneg %p219
        $region66: #{tpu_custom_call.1} parent=43 // pred_check_branch
          %725 = sbr.rel (%p723) target = $region68
        $region67: #{tpu_custom_call.1} parent=43 // pred_region
          %726 = dma.done [#allocation6], 16
        $region68: #{tpu_custom_call.1} parent=43 // pred_fallthru
          _
      $region44: #{tpu_custom_call.1} parent=5 // pred_fallthru
        _
      %p727 = scmp.le.s32.totalorder 2, %s18
      // Predicated region
      $region69: #{tpu_custom_call.1} parent=5 // pred_check
        %p728 = pneg %p727
      $region70: #{tpu_custom_call.1} parent=5 // pred_check_branch
        %730 = sbr.rel (%p728) target = $region72
      $region71: #{tpu_custom_call.1} parent=5 // pred_region
        %s731 = ssub.s32 %s18, 2
        // Predicated region
        $region73: #{tpu_custom_call.1} parent=71 // pred_check
          %p732 = pneg %p183
        $region74: #{tpu_custom_call.1} parent=71 // pred_check_branch
          %734 = sbr.rel (%p732) target = $region76
        $region75: #{tpu_custom_call.1} parent=71 // pred_region
          %s735 = smul.u32 8, %s24
          %p736 = scmp.lt.s32.totalorder %s735, 15
          %s737 = scalar_select %p736, %s735, 15
          %s738 = smul.addr %s737, 8
          %s739 = scalar_lea.vmem %s6, %s738
        $region76: #{tpu_custom_call.1} parent=71 // pred_fallthru
          _
      $region72: #{tpu_custom_call.1} parent=5 // pred_fallthru
        _
    $region6: #{tpu_custom_call.1} parent=1 // loop_footer
      %s22 = sadd.s32 1, %s18
    $region7: #{tpu_custom_call.1} parent=1 // loop_footer_branch
      %17 = sbr.rel target = $region3
    $region8: #{tpu_custom_call.1} parent=1 // loop_exit
      _
    %740 = vsyncpa [#allocation4], 1
    %s741 = scalar_lea.sflag [#allocation4], 1
    %742 = vsyncpa %s741, 1
    %743 = vsyncpa [#allocation6], 1

</llo_original>
